<compile_context>
chip_gen: v7x
topology: tpu7x:2x2x1
jax: 0.10.0
libtpu: 0.0.40
codegen_flags: <defaults>
</compile_context>

<pallas_src>
import functools

import jax
import jax.numpy as jnp
from jax.experimental import pallas as pl
from jax.experimental.pallas import tpu as pltpu


# ----------------------------------------------------------------------------
# Tile / padding helpers
# ----------------------------------------------------------------------------
def _pick_sublane_tile(dim, pref=512):
    """Largest tile <= pref dividing dim, multiple of 16 (bf16 packing) then 8."""
    if dim <= pref:
        return dim
    for step in (16, 8):
        best = 0
        for d in range(step, pref + 1, step):
            if dim % d == 0:
                best = d
        if best:
            return best
    # TODO(synk): pad M instead of a full-dim fallback for awkward shapes.
    return dim


def _pick_lane_tile(dim, pref=512):
    """Largest tile <= pref dividing dim that is a multiple of 128 (or full dim)."""
    if dim <= pref:
        return dim
    best = 0
    for d in range(128, pref + 1, 128):
        if dim % d == 0:
            best = d
    return best if best else dim


def _pad_channels(c):
    """Lane-dense stores: pad the matmul N dim to a multiple of 128 for c>=32."""
    if c % 128 == 0 or c < 32:
        return c
    return ((c + 127) // 128) * 128


def _pad_cols(w, cp):
    return w if cp == w.shape[1] else jnp.pad(w, ((0, 0), (0, cp - w.shape[1])))


# ----------------------------------------------------------------------------
# Tiled matmul kernels: out = post_act(x @ w + b), optional per-column stats
# ----------------------------------------------------------------------------
_RESIDENT_W_BYTES = 16 * 1024 * 1024     # budget for a double-buffered full-K weight


def _mm_kernel_single(post_act, compute_stats):
    """gk == 1: no reduction axis, no accumulator scratch."""
    def kernel(x_ref, w_ref, b_ref, o_ref, *rest):
        y = jnp.dot(x_ref[...], w_ref[...], preferred_element_type=jnp.float32)
        y = y + b_ref[...]
        if compute_stats:
            stats_ref = rest[0]
            ssum = jnp.sum(y, axis=0, keepdims=True)
            ssq = jnp.sum(y * y, axis=0, keepdims=True)
            stats_ref[...] = jnp.concatenate([ssum, ssq], axis=0)[None]
        if post_act == "tanh":
            y = jnp.tanh(y)
        o_ref[...] = y.astype(o_ref.dtype)
    return kernel


def _mm_kernel_reduce(post_act, compute_stats, w_resident, tk):
    """gk > 1: K-reduction grid with f32 VMEM accumulator."""
    def kernel(x_ref, w_ref, b_ref, o_ref, *rest):
        if compute_stats:
            stats_ref, acc_ref = rest
        else:
            (acc_ref,) = rest
        k = pl.program_id(2)

        @pl.when(k == 0)
        def _():
            acc_ref[...] = jnp.zeros_like(acc_ref)

        if w_resident:
            wk = w_ref[pl.ds(pl.multiple_of(k * tk, tk), tk), :]
        else:
            wk = w_ref[...]
        acc_ref[...] += jnp.dot(x_ref[...], wk, preferred_element_type=jnp.float32)

        @pl.when(k == pl.num_programs(2) - 1)
        def _():
            y = acc_ref[...] + b_ref[...]
            if compute_stats:
                ssum = jnp.sum(y, axis=0, keepdims=True)
                ssq = jnp.sum(y * y, axis=0, keepdims=True)
                stats_ref[...] = jnp.concatenate([ssum, ssq], axis=0)[None]
            if post_act == "tanh":
                y = jnp.tanh(y)
            o_ref[...] = y.astype(o_ref.dtype)
    return kernel


def matmul_bias_act(x, w, b, *, post_act="none", compute_stats=False,
                    out_dtype=jnp.bfloat16):
    """y = post_act(x @ w + b).  x:(M,K) w:(K,Cp) b:(Cp,).
    bf16 MXU operands, f32 accumulation.  Optionally also returns per-column
    (sum, sumsq) of y (computed from the f32 accumulator, pre-rounding)."""
    M, K = x.shape
    K2, Cp = w.shape
    assert K == K2
    tm = _pick_sublane_tile(M, 512)
    tk = _pick_lane_tile(K, 512)
    tn = _pick_lane_tile(Cp, 512)
    gm, gn, gk = M // tm, Cp // tn, K // tk
    # v7x has 2 TensorCores: expose >=2 parallel tiles on bigger layers.
    if gm * gn == 1 and M >= 256:
        tm = _pick_sublane_tile(M, M // 2)
        gm = M // tm

    x = x.astype(jnp.bfloat16)
    w = w.astype(jnp.bfloat16)
    b = b.astype(jnp.float32).reshape(1, Cp)

    out_shape = jax.ShapeDtypeStruct((M, Cp), out_dtype)
    if gk == 1:
        grid = (gm, gn)
        x_spec = pl.BlockSpec((tm, tk), lambda i, j: (i, 0))
        w_spec = pl.BlockSpec((K, tn), lambda i, j: (0, j))
        b_spec = pl.BlockSpec((1, tn), lambda i, j: (0, j))
        o_spec = pl.BlockSpec((tm, tn), lambda i, j: (i, j))
        s_spec = pl.BlockSpec((1, 2, tn), lambda i, j: (i, 0, j))
        kernel = _mm_kernel_single(post_act, compute_stats)
        scratch = []
        sem = ("parallel", "parallel")
    else:
        # Keep the full-K weight slab resident in VMEM across the M sweep when
        # its double-buffered footprint fits the budget (review item).
        w_resident = 2 * K * tn * 2 <= _RESIDENT_W_BYTES
        grid = (gm, gn, gk)
        x_spec = pl.BlockSpec((tm, tk), lambda i, j, k: (i, k))
        if w_resident:
            w_spec = pl.BlockSpec((K, tn), lambda i, j, k: (0, j))
        else:
            w_spec = pl.BlockSpec((tk, tn), lambda i, j, k: (k, j))
        b_spec = pl.BlockSpec((1, tn), lambda i, j, k: (0, j))
        o_spec = pl.BlockSpec((tm, tn), lambda i, j, k: (i, j))
        s_spec = pl.BlockSpec((1, 2, tn), lambda i, j, k: (i, 0, j))
        kernel = _mm_kernel_reduce(post_act, compute_stats, w_resident, tk)
        scratch = [pltpu.VMEM((tm, tn), jnp.float32)]
        sem = ("parallel", "parallel", "arbitrary")

    out_shapes = out_shape
    out_specs = o_spec
    if compute_stats:
        out_shapes = (out_shape, jax.ShapeDtypeStruct((gm, 2, Cp), jnp.float32))
        out_specs = (o_spec, s_spec)

    res = pl.pallas_call(
        kernel,
        out_shape=out_shapes,
        grid=grid,
        in_specs=[x_spec, w_spec, b_spec],
        out_specs=out_specs,
        scratch_shapes=scratch,
        compiler_params=pltpu.CompilerParams(
            dimension_semantics=sem,
            vmem_limit_bytes=48 * 1024 * 1024,
        ),
    )(x, w, b)

    if compute_stats:
        y, stats = res
        return y, (jnp.sum(stats[:, 0, :], axis=0), jnp.sum(stats[:, 1, :], axis=0))
    return res


# ----------------------------------------------------------------------------
# Conv2d(k=4, s=2, p=1, bias=False) — im2col (glue) + tiled Pallas matmul
# ----------------------------------------------------------------------------
def conv_down(x_nhwc, w_oihw, *, out_dtype=jnp.bfloat16, use_pallas=True):
    N, H, W, C = x_nhwc.shape
    Cout = w_oihw.shape[0]
    Ho, Wo = H // 2, W // 2

    if not use_pallas:
        # XLA reference path (same bf16 operand precision) for validation.
        y = jax.lax.conv_general_dilated(
            x_nhwc.astype(jnp.bfloat16),
            jnp.transpose(w_oihw, (2, 3, 1, 0)).astype(jnp.bfloat16),
            window_strides=(2, 2), padding=((1, 1), (1, 1)),
            dimension_numbers=("NHWC", "HWIO", "NHWC"),
            preferred_element_type=jnp.float32)
        return y.astype(out_dtype)

    Cp = _pad_channels(Cout)
    xp = jnp.pad(x_nhwc, ((0, 0), (1, 1), (1, 1), (0, 0)))
    cols = [xp[:, kh:kh + 2 * Ho:2, kw:kw + 2 * Wo:2, :]
            for kh in range(4) for kw in range(4)]
    patches = jnp.concatenate(cols, axis=-1).reshape(N * Ho * Wo, 16 * C)
    wmat = _pad_cols(jnp.transpose(w_oihw, (2, 3, 1, 0)).reshape(16 * C, Cout), Cp)
    bias = jnp.zeros((Cp,), jnp.float32)
    y = matmul_bias_act(patches, wmat, bias, out_dtype=out_dtype)
    return y[:, :Cout].reshape(N, Ho, Wo, Cout)


# ----------------------------------------------------------------------------
# ConvTranspose2d(k=4, s=2, p=1) — fused 4-phase sub-pixel decomposition:
# one shared 3x3-neighborhood im2col, one matmul with N dim = 4*Cout.
# ----------------------------------------------------------------------------
def conv_up(x_nhwc, w_iohw, bias_vec, *, post_act="none", bn=None,
            out_dtype=jnp.bfloat16, use_pallas=True):
    N, H, W, Cin = x_nhwc.shape
    Cout = w_iohw.shape[1]
    if bias_vec is None:
        bias_vec = jnp.zeros((Cout,), jnp.float32)

    if use_pallas:
        C4 = 4 * Cout
        Cp = _pad_channels(C4)
        xp = jnp.pad(x_nhwc, ((0, 0), (1, 1), (1, 1), (0, 0)))
        cols = [xp[:, dy:dy + H, dx:dx + W, :] for dy in range(3) for dx in range(3)]
        patches = jnp.concatenate(cols, axis=-1).reshape(N * H * W, 9 * Cin)

        # Column-stacked phase weights: rows ordered (dy,dx,cin), cols (di,dj,c).
        # Phase (di,dj) output pixel (i,j) = sum_{r,s in {0,1}} x[i+di+r-1, j+dj+s-1]
        #                                    * w[:, c, 3-di-2r, 3-dj-2s].
        wf = jnp.zeros((3, 3, Cin, 2, 2, Cout), w_iohw.dtype)
        for di in range(2):
            for dj in range(2):
                for r in range(2):
                    for s in range(2):
                        wf = wf.at[di + r, dj + s, :, di, dj, :].set(
                            w_iohw[:, :, 3 - di - 2 * r, 3 - dj - 2 * s])
        wmat = _pad_cols(wf.reshape(9 * Cin, C4), Cp)
        bfull = jnp.pad(jnp.tile(bias_vec.astype(jnp.float32), 4), (0, Cp - C4))

        if bn is not None:
            y, (s_c, sq_c) = matmul_bias_act(patches, wmat, bfull, post_act=post_act,
                                             compute_stats=True, out_dtype=out_dtype)
            s_c = jnp.sum(s_c[:C4].reshape(4, Cout), axis=0)
            sq_c = jnp.sum(sq_c[:C4].reshape(4, Cout), axis=0)
        else:
            y = matmul_bias_act(patches, wmat, bfull, post_act=post_act,
                                out_dtype=out_dtype)

        # Pixel shuffle: (M, (di,dj,c)) -> (N, 2H, 2W, Cout) with one transpose.
        y = y[:, :C4].reshape(N, H, W, 2, 2, Cout)
        out = jnp.transpose(y, (0, 1, 3, 2, 4, 5)).reshape(N, 2 * H, 2 * W, Cout)
    else:
        # XLA reference: transposed conv as an input-dilated conv with a
        # spatially flipped kernel (same bf16 operand precision).
        rhs = jnp.transpose(w_iohw[:, :, ::-1, ::-1], (2, 3, 0, 1))   # HWIO
        yf = jax.lax.conv_general_dilated(
            x_nhwc.astype(jnp.bfloat16), rhs.astype(jnp.bfloat16),
            window_strides=(1, 1), padding=((2, 2), (2, 2)),
            lhs_dilation=(2, 2),
            dimension_numbers=("NHWC", "HWIO", "NHWC"),
            preferred_element_type=jnp.float32)
        yf = yf + bias_vec.astype(jnp.float32)
        if bn is not None:
            s_c = jnp.sum(yf, axis=(0, 1, 2))
            sq_c = jnp.sum(yf * yf, axis=(0, 1, 2))
        if post_act == "tanh":
            yf = jnp.tanh(yf)
        out = yf.astype(out_dtype)

    if bn is None:
        return out, None
    gamma, beta = bn
    cnt = 4.0 * N * H * W                        # = N * (2H) * (2W)
    mean = s_c / cnt
    var = jnp.maximum(sq_c / cnt - mean * mean, 0.0)   # biased var (training BN)
    scale = gamma * jax.lax.rsqrt(var + 1e-5)
    shift = beta - mean * scale
    return out, (scale, shift)                   # BN applied lazily by the consumer


# ----------------------------------------------------------------------------
# Parameters (deterministic synthetic init; matches the __init__ shapes)
# ----------------------------------------------------------------------------
def init_params(key, input_nc, guide_nc, output_nc, num_downs, ngf):
    keys = iter(jax.random.split(key, 128))

    def conv_w(cout, cin):
        return jax.random.normal(next(keys), (cout, cin, 4, 4), jnp.float32) / jnp.sqrt(cin * 16.0)

    def convT_w(cin, cout):
        return jax.random.normal(next(keys), (cin, cout, 4, 4), jnp.float32) / jnp.sqrt(cin * 16.0)

    p = {}
    # down path (norm_layer == BatchNorm2d -> use_bias = False)
    p["d1"] = conv_w(ngf, input_nc)
    p["d2"] = conv_w(ngf * 2, ngf)
    p["d3"] = conv_w(ngf * 4, ngf * 2)
    p["d4"] = conv_w(ngf * 8, ngf * 4)
    p["dd"] = [conv_w(ngf * 8, ngf * 8) for _ in range(num_downs - 5)]
    p["d5"] = conv_w(ngf * 8, ngf * 8)
    # guide down path (dead in forward(): never reaches the output)
    p["g1"] = conv_w(ngf, guide_nc)
    p["g2"] = conv_w(ngf * 2, ngf)
    p["g3"] = conv_w(ngf * 4, ngf * 2)
    p["g4"] = conv_w(ngf * 8, ngf * 4)
    p["gd"] = [conv_w(ngf * 8, ngf * 8) for _ in range(num_downs - 5)]
    # up path
    p["u1"] = convT_w(ngf * 8, ngf * 8)
    p["uu"] = [convT_w(ngf * 16, ngf * 8) for _ in range(num_downs - 5)]
    p["u2"] = convT_w(ngf * 16, ngf * 4)
    p["u3"] = convT_w(ngf * 8, ngf * 2)
    p["u4"] = convT_w(ngf * 4, ngf)
    p["u5"] = convT_w(ngf * 2, output_nc)
    p["u5_b"] = 0.01 * jax.random.normal(next(keys), (output_nc,), jnp.float32)  # bias=True
    # BatchNorm affine params (PyTorch default: weight=1, bias=0)
    for name, c in [("u1", ngf * 8), ("u2", ngf * 4), ("u3", ngf * 2), ("u4", ngf)]:
        p[f"bn_{name}_g"] = jnp.ones((c,), jnp.float32)
        p[f"bn_{name}_b"] = jnp.zeros((c,), jnp.float32)
    p["bn_uu_g"] = [jnp.ones((ngf * 8,), jnp.float32) for _ in range(num_downs - 5)]
    p["bn_uu_b"] = [jnp.zeros((ngf * 8,), jnp.float32) for _ in range(num_downs - 5)]
    return p


# ----------------------------------------------------------------------------
# Forward pass (mirrors bFT_Unet_cat.forward)
# ----------------------------------------------------------------------------
def bft_unet_cat_forward(params, input_nchw, guide_nchw, num_downs,
                         compute_guide_branch=False, use_pallas=True):
    leaky = lambda t: jnp.where(t > 0, t, 0.2 * t)       # LeakyReLU(0.2)
    relu = lambda t: jnp.maximum(t, 0.0)

    def bn_relu(y_raw, aff):
        scale, shift = aff
        return relu(y_raw.astype(jnp.float32) * scale + shift).astype(jnp.bfloat16)

    cd = functools.partial(conv_down, use_pallas=use_pallas)
    cu = functools.partial(conv_up, use_pallas=use_pallas)

    x = jnp.transpose(input_nchw, (0, 2, 3, 1)).astype(jnp.bfloat16)   # NCHW -> NHWC

    # down path (pre-activations applied once per element, at the producer)
    down1 = cd(x, params["d1"])
    down2 = cd(leaky(down1), params["d2"])
    down3 = cd(leaky(down2), params["d3"])
    down4 = cd(leaky(down3), params["d4"])
    down = []
    for i in range(num_downs - 5):
        src = down4 if i == 0 else down[i - 1]
        down.append(cd(leaky(src), params["dd"][i]))
    down5 = cd(leaky(down[-1]), params["d5"])

    if compute_guide_branch:
        # Computed by the PyTorch forward() but never used for the output.
        g = jnp.transpose(guide_nchw, (0, 2, 3, 1)).astype(jnp.bfloat16)
        G = cd(g, params["g1"])
        G = cd(leaky(G), params["g2"])
        G = cd(leaky(G), params["g3"])
        G = cd(leaky(G), params["g4"])
        for i in range(num_downs - 5):
            G = cd(leaky(G), params["gd"][i])

    # up path: each conv_up returns the raw conv output + (scale, shift) of the
    # fused BatchNorm; the normalization + ReLU are applied by the next layer.
    up_raw, aff = cu(relu(down5), params["u1"], None,
                     bn=(params["bn_u1_g"], params["bn_u1_b"]))
    num_down = num_downs - 5
    for i in range(num_downs - 5):
        num_down -= 1
        cat = jnp.concatenate([relu(down[num_down]), bn_relu(up_raw, aff)], axis=-1)
        up_raw, aff = cu(cat, params["uu"][i], None,
                         bn=(params["bn_uu_g"][i], params["bn_uu_b"][i]))
    cat = jnp.concatenate([relu(down4), bn_relu(up_raw, aff)], axis=-1)
    up_raw, aff = cu(cat, params["u2"], None, bn=(params["bn_u2_g"], params["bn_u2_b"]))
    cat = jnp.concatenate([relu(down3), bn_relu(up_raw, aff)], axis=-1)
    up_raw, aff = cu(cat, params["u3"], None, bn=(params["bn_u3_g"], params["bn_u3_b"]))
    cat = jnp.concatenate([relu(down2), bn_relu(up_raw, aff)], axis=-1)
    up_raw, aff = cu(cat, params["u4"], None, bn=(params["bn_u4_g"], params["bn_u4_b"]))
    cat = jnp.concatenate([relu(down1), bn_relu(up_raw, aff)], axis=-1)
    out, _ = cu(cat, params["u5"], params["u5_b"], post_act="tanh",
                bn=None, out_dtype=jnp.float32)

    return jnp.transpose(out, (0, 3, 1, 2))               # back to NCHW


# ----------------------------------------------------------------------------
if __name__ == "__main__":
    key = jax.random.PRNGKey(0)
    k_in, k_guide, k_param, k_t1, k_t2, k_t3, k_t4 = jax.random.split(key, 7)

    # --- unit check: Pallas conv_down vs f32 lax.conv reference ------------
    xd = jax.random.normal(k_t1, (2, 16, 16, 6), jnp.float32)
    wd = jax.random.normal(k_t2, (48, 6, 4, 4), jnp.float32) / jnp.sqrt(6 * 16.0)
    got_d = conv_down(xd, wd, out_dtype=jnp.float32).astype(jnp.float32)
    ref_d = jax.lax.conv_general_dilated(
        xd, jnp.transpose(wd, (2, 3, 1, 0)), (2, 2), ((1, 1), (1, 1)),
        dimension_numbers=("NHWC", "HWIO", "NHWC"),
        precision=jax.lax.Precision.HIGHEST)
    err_d = jnp.max(jnp.abs(got_d - ref_d)) / jnp.maximum(jnp.max(jnp.abs(ref_d)), 1e-3)
    assert float(err_d) < 0.05, f"conv_down mismatch: {float(err_d)}"

    # --- unit check: fused Pallas conv_up (+BN stats) vs f32 reference -----
    xu = jax.random.normal(k_t3, (2, 8, 8, 128), jnp.float32)
    wu = jax.random.normal(k_t4, (128, 32, 4, 4), jnp.float32) / jnp.sqrt(128 * 16.0)
    gamma = jnp.ones((32,), jnp.float32)
    beta = jnp.zeros((32,), jnp.float32)
    raw_u, (scale_u, shift_u) = conv_up(xu, wu, None, bn=(gamma, beta),
                                        out_dtype=jnp.float32)
    got_u = raw_u.astype(jnp.float32) * scale_u + shift_u
    rhs_u = jnp.transpose(wu[:, :, ::-1, ::-1], (2, 3, 0, 1))
    ref_raw = jax.lax.conv_general_dilated(
        xu, rhs_u, (1, 1), ((2, 2), (2, 2)), lhs_dilation=(2, 2),
        dimension_numbers=("NHWC", "HWIO", "NHWC"),
        precision=jax.lax.Precision.HIGHEST)
    mu = jnp.mean(ref_raw, axis=(0, 1, 2))
    var = jnp.var(ref_raw, axis=(0, 1, 2))
    ref_u = (ref_raw - mu) * jax.lax.rsqrt(var + 1e-5)
    err_u = jnp.max(jnp.abs(got_u - ref_u)) / jnp.maximum(jnp.max(jnp.abs(ref_u)), 1e-3)
    assert float(err_u) < 0.05, f"conv_up mismatch: {float(err_u)}"

    # --- full model -----------------------------------------------------------
    # num_downs must be >= 6 (forward indexes down[-1]); spatial 64 = 2**6 so
    # the innermost feature map is 1x1.
    N, input_nc, guide_nc, output_nc = 2, 3, 1, 2
    num_downs, ngf = 6, 8
    H = W = 64

    x = jax.random.normal(k_in, (N, input_nc, H, W), jnp.float32)
    guide = jax.random.normal(k_guide, (N, guide_nc, H, W), jnp.float32)
    params = init_params(k_param, input_nc, guide_nc, output_nc, num_downs, ngf)

    fwd = jax.jit(functools.partial(bft_unet_cat_forward, num_downs=num_downs))
    out = jax.block_until_ready(fwd(params, x, guide))
    assert out.shape == (N, output_nc, H, W), out.shape
    assert bool(jnp.all(jnp.isfinite(out)))

    # End-to-end check against the same forward built on lax convs (identical
    # bf16 operand precision) -> validates im2col, phase/pixel-shuffle, fused
    # BN stats, concat order and padding/slicing glue.
    ref_fwd = jax.jit(functools.partial(bft_unet_cat_forward, num_downs=num_downs,
                                        use_pallas=False))
    out_ref = jax.block_until_ready(ref_fwd(params, x, guide))
    e2e = float(jnp.max(jnp.abs(out - out_ref)))
    assert e2e < 0.1, f"forward mismatch vs lax reference: {e2e}"

    print("KERNEL_OK")
</pallas_src>

<mosaic_0001>
module attributes {stable_mosaic.version = 11 : i64} {
  func.func @kernel(%arg0: i32, %arg1: i32, %arg2: memref<128x96xbf16, #tpu.memory_space<vmem>>, %arg3: memref<96x128xbf16, #tpu.memory_space<vmem>>, %arg4: memref<1x128xf32, #tpu.memory_space<vmem>>, %arg5: memref<128x128xf32, #tpu.memory_space<vmem>>) attributes {dimension_semantics = [#tpu.dimension_semantics<parallel>, #tpu.dimension_semantics<parallel>], iteration_bounds = array<i64: 1, 1>, scalar_prefetch = 0 : i64, scratch_operands = 0 : i64, tpu.core_type = #tpu.core_type<tc>, window_params = [{transform_indices = @transform_0, window_bounds = array<i64: 128, 96>}, {transform_indices = @transform_1, window_bounds = array<i64: 96, 128>}, {transform_indices = @transform_2, window_bounds = array<i64: 1, 128>}, {transform_indices = @transform_3, window_bounds = array<i64: 128, 128>}]} {
    %c0 = arith.constant 0 : index
    %c0_0 = arith.constant 0 : index
    %0 = vector.load %arg2[%c0, %c0_0] : memref<128x96xbf16, #tpu.memory_space<vmem>>, vector<128x96xbf16>
    %c0_1 = arith.constant 0 : index
    %c0_2 = arith.constant 0 : index
    %1 = vector.load %arg3[%c0_1, %c0_2] : memref<96x128xbf16, #tpu.memory_space<vmem>>, vector<96x128xbf16>
    %cst = arith.constant dense<0.000000e+00> : vector<128x128xf32>
    %2 = tpu.matmul %0, %1, %cst {dimension_numbers = #tpu.dot_dimension_numbers<[1], [0], [0], [1], [0, 0, 1, 1], [], []>} : vector<128x96xbf16>, vector<96x128xbf16>, vector<128x128xf32> -> vector<128x128xf32>
    %c0_3 = arith.constant 0 : index
    %c0_4 = arith.constant 0 : index
    %3 = vector.load %arg4[%c0_3, %c0_4] : memref<1x128xf32, #tpu.memory_space<vmem>>, vector<1x128xf32>
    %4 = vector.broadcast %3 : vector<1x128xf32> to vector<128x128xf32>
    %5 = arith.addf %2, %4 : vector<128x128xf32>
    %c0_5 = arith.constant 0 : index
    %c0_6 = arith.constant 0 : index
    %6 = vector.load %arg5[%c0_5, %c0_6] : memref<128x128xf32, #tpu.memory_space<vmem>>, vector<128x128xf32>
    tpu.vector_store %arg5[%c0_5, %c0_6], %5 {strides = array<i32>} : memref<128x128xf32, #tpu.memory_space<vmem>>, vector<128x128xf32>,
    return
  }
  func.func @transform_0(%arg0: i32, %arg1: i32) -> (i32, i32) {
    %c0_i32 = arith.constant 0 : i32
    %c0_i32_0 = arith.constant 0 : i32
    return %arg0, %c0_i32 : i32, i32
  }
  func.func @transform_1(%arg0: i32, %arg1: i32) -> (i32, i32) {
    %c0_i32 = arith.constant 0 : i32
    %c0_i32_0 = arith.constant 0 : i32
    return %c0_i32, %arg1 : i32, i32
  }
  func.func @transform_2(%arg0: i32, %arg1: i32) -> (i32, i32) {
    %c0_i32 = arith.constant 0 : i32
    %c0_i32_0 = arith.constant 0 : i32
    return %c0_i32, %arg1 : i32, i32
  }
  func.func @transform_3(%arg0: i32, %arg1: i32) -> (i32, i32) {
    %c0_i32 = arith.constant 0 : i32
    return %arg0, %arg1 : i32, i32
  }
}

</mosaic_0001>

<llo_original>
// kernel: tpu_custom_call.1
$region0: #{tpu_custom_call.1}
  #allocation0 [shape = 'u32[]', space=smem, size = 0x4, offset = 0x4, fixed_abs, tag = 'smem constant byte address 0x4 - core index']
  #allocation1 [shape = 'u32[144,128]{1,0:T(1,128)}', space=vmem, size = 0x12000, scoped, tag = 'internal scratch']
  %s0 = inlined_call_operand.vmem [shape: bf16[128,96], index: 0, kind: input, shape index: {}]
  %s1 = inlined_call_operand.vmem [shape: bf16[96,128], index: 1, kind: input, shape index: {}]
  %s2 = inlined_call_operand.vmem [shape: f32[1,128], index: 2, kind: input, shape index: {}]
  %s3 = inlined_call_operand.hbm [shape: f32[128,128], index: 3, kind: output, shape index: {}]
  %s4 = sld [smem:[#allocation0]]
  $region22: #{tpu_custom_call.1} parent=0
    _
  %s6 = ssub.s32 1, %s4
  %s7 = scalar_select 0, %s6, %s4
  $region1: #{tpu_custom_call.1} parent=0
    #allocation2 [shape = 'u8[65536]{0}', space=vmem, size = 0x10000, scoped, tag = 'output window, operand 0, single buffered']
    #allocation3 [shape = 's32[1]{0}', space=sflag, size = 0x4, scoped, tag = 'scoped memory for tpu_custom_call.1']
    %8 = vsyncpa [#allocation3], 0
    // Predicated region
    $region2: #{tpu_custom_call.1} parent=1 // pred_check
      _
    $region3: #{tpu_custom_call.1} parent=1 // pred_check_branch
      %10 = sbr.rel (0) target = $region5
    $region4: #{tpu_custom_call.1} parent=1 // pred_region
      _
    $region5: #{tpu_custom_call.1} parent=1 // pred_fallthru
      _
    // Predicated region
    $region6: #{tpu_custom_call.1} parent=1 // pred_check
      _
    $region7: #{tpu_custom_call.1} parent=1 // pred_check_branch
      %12 = sbr.rel (0) target = $region9
    $region8: #{tpu_custom_call.1} parent=1 // pred_region
      _
    $region9: #{tpu_custom_call.1} parent=1 // pred_fallthru
      _
    // Predicated region
    $region10: #{tpu_custom_call.1} parent=1 // pred_check
      _
    $region11: #{tpu_custom_call.1} parent=1 // pred_check_branch
      %14 = sbr.rel (0) target = $region13
    $region12: #{tpu_custom_call.1} parent=1 // pred_region
      _
    $region13: #{tpu_custom_call.1} parent=1 // pred_fallthru
      _
    %v16 = vld [vmem:[%s0] sm:$0xf]
    %v17 = vld [vmem:[%s0 + $0x4] sm:$0xf]
    %v18 = vld [vmem:[%s0 + $0x8] sm:$0xf]
    %v19 = vld [vmem:[%s0 + $0xc] sm:$0xf]
    %v20 = vld [vmem:[%s0 + $0x10] sm:$0xf]
    %v21 = vld [vmem:[%s0 + $0x14] sm:$0xf]
    %v22 = vld [vmem:[%s0 + $0x18] sm:$0xf]
    %v23 = vld [vmem:[%s0 + $0x1c] sm:$0xf]
    %v24 = vld [vmem:[%s0 + $0x20] sm:$0xf]
    %v25 = vld [vmem:[%s0 + $0x24] sm:$0xf]
    %v26 = vld [vmem:[%s0 + $0x28] sm:$0xf]
    %v27 = vld [vmem:[%s0 + $0x2c] sm:$0xf]
    %v28 = vld [vmem:[%s0 + $0x30] sm:$0xf]
    %v29 = vld [vmem:[%s0 + $0x34] sm:$0xf]
    %v30 = vld [vmem:[%s0 + $0x38] sm:$0xf]
    %v31 = vld [vmem:[%s0 + $0x3c] sm:$0xf]
    %v32 = vld [vmem:[%s1] sm:$0xf]
    %v33 = vld [vmem:[%s1 + $0x4] sm:$0xf]
    %v34 = vld [vmem:[%s1 + $0x8] sm:$0xf]
    %v35 = vld [vmem:[%s1 + $0xc] sm:$0xf]
    %v36 = vld [vmem:[%s1 + $0x10] sm:$0xf]
    %v37 = vld [vmem:[%s1 + $0x14] sm:$0xf]
    %v38 = vld [vmem:[%s1 + $0x18] sm:$0xf]
    %v39 = vld [vmem:[%s1 + $0x1c] sm:$0xf]
    %v40 = vld [vmem:[%s1 + $0x20] sm:$0xf]
    %v41 = vld [vmem:[%s1 + $0x24] sm:$0xf]
    %v42 = vld [vmem:[%s1 + $0x28] sm:$0xf]
    %v43 = vld [vmem:[%s1 + $0x2c] sm:$0xf]
    %v44 = vld [vmem:[%s2] sm:$0x1]
    %v46 = vlaneseq
    %v47 = vshrl.u32 %v46, 7
    %v48 = vsub.s32 0, %v47
    %v49 = vrot.slane %v44, %v48
    %v67 = vunpack.c.l.b16 %v16
    %v68 = vunpack.c.l.b16 %v17
    %v69 = vunpack.c.l.b16 %v18
    %v70 = vunpack.c.l.b16 %v19
    %v71 = vunpack.c.l.b16 %v20
    %v72 = vunpack.c.l.b16 %v21
    %v73 = vunpack.c.l.b16 %v22
    %v74 = vunpack.c.l.b16 %v23
    %v75 = vunpack.c.l.b16 %v24
    %v76 = vunpack.c.l.b16 %v25
    %v77 = vunpack.c.l.b16 %v26
    %v78 = vunpack.c.l.b16 %v27
    %v79 = vunpack.c.l.b16 %v28
    %v80 = vunpack.c.l.b16 %v29
    %v81 = vunpack.c.l.b16 %v30
    %v82 = vunpack.c.l.b16 %v31
    %v83 = vpack.c.b16 %v68, %v67
    %v84 = vpack.c.b16 %v70, %v69
    %v85 = vpack.c.b16 %v72, %v71
    %v86 = vpack.c.b16 %v74, %v73
    %v87 = vpack.c.b16 %v76, %v75
    %v88 = vpack.c.b16 %v78, %v77
    %v89 = vpack.c.b16 %v80, %v79
    %v90 = vpack.c.b16 %v82, %v81
    %v103 = vunpack.c.l.b16 %v32
    %v104 = vunpack.c.l.b16 %v33
    %v105 = vunpack.c.l.b16 %v34
    %v106 = vunpack.c.l.b16 %v35
    %v107 = vunpack.c.l.b16 %v36
    %v108 = vunpack.c.l.b16 %v37
    %v109 = vunpack.c.l.b16 %v38
    %v110 = vunpack.c.l.b16 %v39
    %v111 = vunpack.c.l.b16 %v40
    %v112 = vunpack.c.l.b16 %v41
    %v113 = vunpack.c.l.b16 %v42
    %v114 = vunpack.c.l.b16 %v43
    %v115 = vpack.c.b16 %v104, %v103
    %v116 = vpack.c.b16 %v106, %v105
    %v117 = vpack.c.b16 %v108, %v107
    %v118 = vpack.c.b16 %v110, %v109
    %v119 = vpack.c.b16 %v112, %v111
    %v120 = vpack.c.b16 %v114, %v113
    %vm127 = vcmask 785408
    %v129 = vsel %vm127, %v83, 0
    %v132 = vsel %vm127, %v84, 0
    %v135 = vsel %vm127, %v85, 0
    %v138 = vsel %vm127, %v86, 0
    %v141 = vsel %vm127, %v87, 0
    %v144 = vsel %vm127, %v88, 0
    %v147 = vsel %vm127, %v89, 0
    %v150 = vsel %vm127, %v90, 0
    %152 = vmatprep.subr.bf16.mxu0 0
    %153 = vmatpush1.bf16.msra.mxu0 %v115
    %154 = vmatprep.subr.bf16.mxu0 0
    %155 = vmatpush1.bf16.msra.mxu0 %v116
    %156 = vmatprep.subr.bf16.mxu0 0
    %157 = vmatpush1.bf16.msra.mxu0 %v117
    %158 = vmatprep.subr.bf16.mxu0 0
    %159 = vmatpush1.bf16.msra.mxu0 %v118
    %160 = vmatprep.subr.bf16.mxu0 0
    %161 = vmatpush1.bf16.msra.mxu0 %v119
    %162 = vmatprep.subr.bf16.mxu0 0
    %163 = vmatpush1.bf16.msra.mxu0 %v120
    %164 = vmatprep.subr.bf16.mxu0 0
    %165 = vmatpush1.bf16.msra.mxu0 0
    %166 = vmatprep.subr.bf16.mxu0 0
    %167 = vmatpush1.bf16.msra.mxu0 0
    %168 = vmatprep.subr.bf16.mxu0 0
    %169 = vmatpush1.bf16.msra.mxu0 0
    %170 = vmatprep.subr.bf16.mxu0 0
    %171 = vmatpush1.bf16.msra.mxu0 0
    %172 = vmatprep.subr.bf16.mxu0 0
    %173 = vmatpush1.bf16.msra.mxu0 0
    %174 = vmatprep.subr.bf16.mxu0 0
    %175 = vmatpush1.bf16.msra.mxu0 0
    %176 = vmatprep.subr.bf16.mxu0 0
    %177 = vmatpush1.bf16.msra.mxu0 0
    %178 = vmatprep.subr.bf16.mxu0 0
    %179 = vmatpush1.bf16.msra.mxu0 0
    %180 = vmatprep.subr.bf16.mxu0 0
    %181 = vmatpush1.bf16.msra.mxu0 0
    %182 = vmatprep.subr.bf16.mxu0 0
    %183 = vmatpush1.bf16.msra.mxu0 0
    %184 = vmatprep.mubr.bf16.mxu0 0
    %185 = vmatmul.mubr.bf16.gmra.mrb[0].mxu0 %v129
    %v186 = vpop.f32.mrb[0].mxu0
    %v187 = vadd.f32 %v49, %v186
    %v188 = vpop.f32.mrb[0].mxu0
    %v189 = vpop.f32.mrb[0].mxu0
    %v190 = vadd.f32 %v49, %v189
    %v191 = vpop.f32.mrb[0].mxu0
    %192 = vmatprep.mubr.bf16.mxu0 0
    %193 = vmatmul.mubr.bf16.gmra.mrb[0].mxu0 %v132
    %v194 = vpop.f32.mrb[0].mxu0
    %v195 = vadd.f32 %v49, %v194
    %v196 = vpop.f32.mrb[0].mxu0
    %v197 = vpop.f32.mrb[0].mxu0
    %v198 = vadd.f32 %v49, %v197
    %v199 = vpop.f32.mrb[0].mxu0
    %200 = vmatprep.mubr.bf16.mxu0 0
    %201 = vmatmul.mubr.bf16.gmra.mrb[0].mxu0 %v135
    %v202 = vpop.f32.mrb[0].mxu0
    %v203 = vadd.f32 %v49, %v202
    %v204 = vpop.f32.mrb[0].mxu0
    %v205 = vpop.f32.mrb[0].mxu0
    %v206 = vadd.f32 %v49, %v205
    %v207 = vpop.f32.mrb[0].mxu0
    %208 = vmatprep.mubr.bf16.mxu0 0
    %209 = vmatmul.mubr.bf16.gmra.mrb[0].mxu0 %v138
    %v210 = vpop.f32.mrb[0].mxu0
    %v211 = vadd.f32 %v49, %v210
    %v212 = vpop.f32.mrb[0].mxu0
    %v213 = vpop.f32.mrb[0].mxu0
    %v214 = vadd.f32 %v49, %v213
    %v215 = vpop.f32.mrb[0].mxu0
    %216 = vmatprep.mubr.bf16.mxu0 0
    %217 = vmatmul.mubr.bf16.gmra.mrb[0].mxu0 %v141
    %v218 = vpop.f32.mrb[0].mxu0
    %v219 = vadd.f32 %v49, %v218
    %v220 = vpop.f32.mrb[0].mxu0
    %v221 = vpop.f32.mrb[0].mxu0
    %v222 = vadd.f32 %v49, %v221
    %v223 = vpop.f32.mrb[0].mxu0
    %224 = vmatprep.mubr.bf16.mxu0 0
    %225 = vmatmul.mubr.bf16.gmra.mrb[0].mxu0 %v144
    %v226 = vpop.f32.mrb[0].mxu0
    %v227 = vadd.f32 %v49, %v226
    %v228 = vpop.f32.mrb[0].mxu0
    %v229 = vpop.f32.mrb[0].mxu0
    %v230 = vadd.f32 %v49, %v229
    %v231 = vpop.f32.mrb[0].mxu0
    %232 = vmatprep.mubr.bf16.mxu0 0
    %233 = vmatmul.mubr.bf16.gmra.mrb[0].mxu0 %v147
    %v234 = vpop.f32.mrb[0].mxu0
    %v235 = vadd.f32 %v49, %v234
    %v236 = vpop.f32.mrb[0].mxu0
    %v237 = vpop.f32.mrb[0].mxu0
    %v238 = vadd.f32 %v49, %v237
    %v239 = vpop.f32.mrb[0].mxu0
    %240 = vmatprep.mubr.bf16.mxu0 0
    %241 = vmatmul.mubr.bf16.gmra.mrb[0].mxu0 %v150
    %v242 = vpop.f32.mrb[0].mxu0
    %v243 = vadd.f32 %v49, %v242
    %v244 = vpop.f32.mrb[0].mxu0
    %v245 = vpop.f32.mrb[0].mxu0
    %v246 = vadd.f32 %v49, %v245
    %v247 = vpop.f32.mrb[0].mxu0
    %248 = vdwg.mxu0
    %249 = vst [vmem:[#allocation2] sm:$0xff] %v187
    %250 = vst [vmem:[#allocation2 + $0x8] sm:$0xff] %v190
    %251 = vst [vmem:[#allocation2 + $0x10] sm:$0xff] %v195
    %252 = vst [vmem:[#allocation2 + $0x18] sm:$0xff] %v198
    %253 = vst [vmem:[#allocation2 + $0x20] sm:$0xff] %v203
    %254 = vst [vmem:[#allocation2 + $0x28] sm:$0xff] %v206
    %255 = vst [vmem:[#allocation2 + $0x30] sm:$0xff] %v211
    %256 = vst [vmem:[#allocation2 + $0x38] sm:$0xff] %v214
    %257 = vst [vmem:[#allocation2 + $0x40] sm:$0xff] %v219
    %258 = vst [vmem:[#allocation2 + $0x48] sm:$0xff] %v222
    %259 = vst [vmem:[#allocation2 + $0x50] sm:$0xff] %v227
    %260 = vst [vmem:[#allocation2 + $0x58] sm:$0xff] %v230
    %261 = vst [vmem:[#allocation2 + $0x60] sm:$0xff] %v235
    %262 = vst [vmem:[#allocation2 + $0x68] sm:$0xff] %v238
    %263 = vst [vmem:[#allocation2 + $0x70] sm:$0xff] %v243
    %264 = vst [vmem:[#allocation2 + $0x78] sm:$0xff] %v246
    // Predicated region
    $region14: #{tpu_custom_call.1} parent=1 // pred_check
      _
    $region15: #{tpu_custom_call.1} parent=1 // pred_check_branch
      %266 = sbr.rel (0) target = $region17
    $region16: #{tpu_custom_call.1} parent=1 // pred_region
      %s268 = ssub.s32 2048, 2048
      %269 = vsyncadd [#allocation3], %s268
      %s270 = sshll.u32 [#allocation2], 4
      %s271 = int_to_ptr.vmem [resolvable:$true] %s270
      %276 = dma.vmem_to_hbm [thread:$0]  %s271, 2048, %s3, [#allocation3], 128, 128, 8
    $region17: #{tpu_custom_call.1} parent=1 // pred_fallthru
      _
    // Predicated region
    $region18: #{tpu_custom_call.1} parent=1 // pred_check
      _
    $region19: #{tpu_custom_call.1} parent=1 // pred_check_branch
      %278 = sbr.rel (0) target = $region21
    $region20: #{tpu_custom_call.1} parent=1 // pred_region
      %279 = dma.done [#allocation3], 2048
    $region21: #{tpu_custom_call.1} parent=1 // pred_fallthru
      _
    %280 = vsyncpa [#allocation3], 1

</llo_original>
